<compile_context>
chip_gen: v6e
topology: v6e:2x2x1
jax: 0.10.0
libtpu: 0.0.40
codegen_flags: <defaults>
</compile_context>

<pallas_src>
import jax
import jax.numpy as jnp
from jax import lax
from jax.experimental import pallas as pl
from jax.experimental.pallas import tpu as pltpu

LANES = 128


def _vmem_capacity_bytes():
    try:
        return int(pltpu.get_tpu_info().vmem_capacity_bytes)
    except Exception:
        return 64 * 1024 * 1024  # conservative (v7x-sized) fallback


def _make_counts_kernel(C, S, HW, steps_per_chunk, needs_mask, upcast):
    """Kernel producing per-(batch, chunk, class) per-lane partial counts."""

    def kernel(pred_ref, gt_ref, out_ref):
        # pred_ref: (1, C, S, 128) native dtype
        # gt_ref:   (1, 1, S, 128) int8 (padded region = -1 sentinel)
        # out_ref:  (1, 1, 3*C, 128) f32 per-lane partial counts
        #           rows [0:C)=TP, [C:2C)=pred_sum, [2C:3C)=gt_sum
        k = pl.program_id(2)

        @pl.when(k == 0)
        def _():
            out_ref[...] = jnp.zeros_like(out_ref)

        def read_class(c):
            v = pred_ref[0, c]                          # (S, 128)
            return v.astype(jnp.float32) if upcast else v

        gt = gt_ref[0, 0].astype(jnp.int32)             # (S, 128)

        # Running argmax over the class axis (first maximal index, matching
        # torch.argmax): strict '>' keeps the first occurrence on ties.
        # TODO(synk): for C approaching 128 switch both class loops to
        # lax.fori_loop(..., unroll=8) to bound instruction count / vreg pressure.
        best = read_class(0)
        label = jnp.zeros((S, LANES), jnp.int32)
        for c in range(1, C):
            cur = read_class(c)
            better = cur > best
            best = jnp.where(better, cur, best)
            label = jnp.where(better, jnp.int32(c), label)

        if needs_mask:
            # Apply the spatial-padding mask ONCE: padded pred labels -> -1
            # sentinel (gt padding is already -1), so no per-class masking ops.
            h = pl.program_id(1)
            blk = h * steps_per_chunk + k
            row = lax.broadcasted_iota(jnp.int32, (S, LANES), 0)
            lane = lax.broadcasted_iota(jnp.int32, (S, LANES), 1)
            pos = blk * (S * LANES) + row * LANES + lane
            label = jnp.where(pos < HW, label, jnp.int32(-1))

        # Per-lane partial counts: sublane reduce only; the 128-lane reduce and
        # the final split into TP / pred_sum / gt_sum happen once, in JAX.
        for c in range(C):
            pred_match = label == c
            gt_match = gt == c
            tp = jnp.sum(jnp.logical_and(pred_match, gt_match).astype(jnp.float32),
                         axis=0, keepdims=True)          # (1, 128)
            ps = jnp.sum(pred_match.astype(jnp.float32), axis=0, keepdims=True)
            gs = jnp.sum(gt_match.astype(jnp.float32), axis=0, keepdims=True)
            out_ref[0, 0, c:c + 1, :] = out_ref[0, 0, c:c + 1, :] + tp
            out_ref[0, 0, C + c:C + c + 1, :] = out_ref[0, 0, C + c:C + c + 1, :] + ps
            out_ref[0, 0, 2 * C + c:2 * C + c + 1, :] = (
                out_ref[0, 0, 2 * C + c:2 * C + c + 1, :] + gs)

    return kernel


def _per_class_counts(prediction, ground_truth):
    """prediction: (B, C, H, W), ground_truth: (B, H, W) int -> three (B, C) f32."""
    B, C, H, W = prediction.shape
    if C > LANES:
        # TODO(synk): lane-dense output layout assumes C <= 128 classes.
        raise NotImplementedError("FScore Pallas kernel supports at most 128 classes")
    HW = H * W

    dt = jnp.dtype(prediction.dtype)
    if dt not in (jnp.dtype(jnp.float32), jnp.dtype(jnp.bfloat16)):
        prediction = prediction.astype(jnp.float32)
        dt = jnp.dtype(jnp.float32)
    itemsize = dt.itemsize

    # Generation-aware budgets (v5e/v6e: 128 MiB VMEM; v7x: 64 MiB per TC).
    vmem_cap = _vmem_capacity_bytes()
    if vmem_cap >= 100 * 1024 * 1024:           # v5e / v6e
        per_input_budget = 16 * 1024 * 1024
        vmem_limit = 64 * 1024 * 1024
    else:                                        # v7x
        per_input_budget = 8 * 1024 * 1024
        vmem_limit = 32 * 1024 * 1024

    budget_rows = per_input_budget // (2 * C * LANES * itemsize)  # double-buffered
    cap = max(32, (budget_rows // 32) * 32)

    R = pl.cdiv(HW, LANES)
    if R <= cap:
        S = R                                    # single spatial tile per (b, chunk)
        R_pad = R
    else:
        # Prefer a divisor of R (multiple of 32) to avoid the wrapper jnp.pad
        # copy of the largest tensor; pad only as a last resort.
        S = None
        for d in range(cap, 31, -32):
            if R % d == 0:
                S = d
                break
        if S is None:
            S = cap
            R_pad = pl.cdiv(R, S) * S
        else:
            R_pad = R
    HW_pad = R_pad * LANES
    needs_mask = HW_pad != HW

    pred = prediction.reshape(B, C, HW)          # native dtype, no astype here
    gt = ground_truth.reshape(B, 1, HW).astype(jnp.int8)   # C <= 128 -> fits int8
    if needs_mask:
        pad = HW_pad - HW
        pred = jnp.pad(pred, ((0, 0), (0, 0), (0, pad)))
        gt = jnp.pad(gt, ((0, 0), (0, 0), (0, pad)), constant_values=-1)  # sentinel
    pred = pred.reshape(B, C, R_pad, LANES)
    gt = gt.reshape(B, 1, R_pad, LANES)

    n_blocks = R_pad // S
    # Recover the second TensorCore (v7x megacore) when B == 1; harmless elsewhere.
    n_chunks = 2 if (B == 1 and n_blocks >= 2 and n_blocks % 2 == 0) else 1
    spc = n_blocks // n_chunks                   # grid steps per chunk

    # bf16 argmax runs packed on v6e/v7x; upcast only on v5e (no bf16 VPU).
    try:
        kind = jax.devices()[0].device_kind.lower()
    except Exception:
        kind = ""
    upcast = (dt == jnp.dtype(jnp.bfloat16)) and ("v5" in kind)

    kernel = _make_counts_kernel(C, S, HW, spc, needs_mask, upcast)

    bytes_accessed = int(pred.size * itemsize + gt.size * 1
                         + B * n_chunks * 3 * C * LANES * 4)
    cost = pl.CostEstimate(flops=int(12 * B * C * HW_pad), transcendentals=0,
                           bytes_accessed=bytes_accessed)

    counts = pl.pallas_call(
        kernel,
        out_shape=jax.ShapeDtypeStruct((B, n_chunks, 3 * C, LANES), jnp.float32),
        grid=(B, n_chunks, spc),
        in_specs=[
            pl.BlockSpec((1, C, S, LANES), lambda b, h, k: (b, 0, h * spc + k, 0)),
            pl.BlockSpec((1, 1, S, LANES), lambda b, h, k: (b, 0, h * spc + k, 0)),
        ],
        out_specs=pl.BlockSpec((1, 1, 3 * C, LANES), lambda b, h, k: (b, h, 0, 0)),
        compiler_params=pltpu.CompilerParams(
            dimension_semantics=("parallel", "parallel", "arbitrary"),
            vmem_limit_bytes=vmem_limit,
        ),
        cost_estimate=cost,
    )(pred, gt)

    totals = counts.sum(axis=(1, 3))             # (B, 3*C): chunk + lane reduce in JAX
    tp = totals[:, :C]
    psum = totals[:, C:2 * C]
    gsum = totals[:, 2 * C:]
    return tp, psum, gsum


def f_score(prediction, ground_truth, smooth=1e-09):
    """Matches FScore.forward: returns a scalar F score."""
    tp, psum, gsum = _per_class_counts(prediction, ground_truth)
    fp = psum - tp
    fn = gsum - tp
    precision = jnp.mean((tp + smooth) / (tp + fp + smooth))   # PrecisionScore (mean over B, C)
    recall = jnp.mean((tp + smooth) / (tp + fn + smooth))      # RecallScore (mean over B, C)
    f = 2.0 * (recall * precision + smooth) / (recall + precision + smooth)
    return f


if __name__ == "__main__":
    key = jax.random.PRNGKey(0)
    k1, k2 = jax.random.split(key)

    B, C, H, W = 2, 4, 16, 16
    prediction = jax.random.normal(k1, (B, C, H, W), dtype=jnp.float32)
    ground_truth = jax.random.randint(k2, (B, H, W), 0, C, dtype=jnp.int32)

    out = f_score(prediction, ground_truth)
    out = jax.block_until_ready(out)

    # pure-JAX reference check (same math, no Pallas)
    labels = jnp.argmax(prediction, axis=1)
    pred_oh = jax.nn.one_hot(labels, C, axis=1, dtype=jnp.float32)
    gt_oh = jax.nn.one_hot(ground_truth, C, axis=1, dtype=jnp.float32)
    tp_ref = jnp.sum(gt_oh * pred_oh, axis=(2, 3))
    fp_ref = jnp.sum(pred_oh, axis=(2, 3)) - tp_ref
    fn_ref = jnp.sum(gt_oh, axis=(2, 3)) - tp_ref
    prec_ref = jnp.mean((tp_ref + 1e-9) / (tp_ref + fp_ref + 1e-9))
    rec_ref = jnp.mean((tp_ref + 1e-9) / (tp_ref + fn_ref + 1e-9))
    f_ref = 2.0 * (rec_ref * prec_ref + 1e-9) / (rec_ref + prec_ref + 1e-9)

    assert abs(float(out) - float(f_ref)) < 1e-5, (float(out), float(f_ref))
    print("KERNEL_OK")
</pallas_src>

<mosaic_0001>
module attributes {stable_mosaic.version = 11 : i64} {
  func.func @kernel(%arg0: i32, %arg1: i32, %arg2: i32, %arg3: memref<1x4x2x128xf32, #tpu.memory_space<vmem>>, %arg4: memref<1x1x2x128xi8, #tpu.memory_space<vmem>>, %arg5: memref<1x1x12x128xf32, #tpu.memory_space<vmem>>) attributes {dimension_semantics = [#tpu.dimension_semantics<parallel>, #tpu.dimension_semantics<parallel>, #tpu.dimension_semantics<arbitrary>], iteration_bounds = array<i64: 2, 1, 1>, scalar_prefetch = 0 : i64, scratch_operands = 0 : i64, tpu.core_type = #tpu.core_type<tc>, window_params = [{transform_indices = @transform_0, window_bounds = array<i64: 1, 4, 2, 128>}, {transform_indices = @transform_1, window_bounds = array<i64: 1, 1, 2, 128>}, {transform_indices = @transform_2, window_bounds = array<i64: 1, 1, 12, 128>}]} {
    %c0_i32 = arith.constant 0 : i32
    %0 = arith.cmpi eq, %arg2, %c0_i32 : i32
    %1 = arith.extui %0 : i1 to i32
    %c0_i32_0 = arith.constant 0 : i32
    %2 = arith.cmpi ne, %1, %c0_i32_0 : i32
    scf.if %2 {
      %cst_125 = arith.constant 0.000000e+00 : f32
      %166 = vector.broadcast %cst_125 : f32 to vector<1x1x12x128xf32>
      %c0_126 = arith.constant 0 : index
      %c0_127 = arith.constant 0 : index
      %c0_128 = arith.constant 0 : index
      %c0_129 = arith.constant 0 : index
      %167 = vector.load %arg5[%c0_126, %c0_127, %c0_128, %c0_129] : memref<1x1x12x128xf32, #tpu.memory_space<vmem>>, vector<1x1x12x128xf32>
      tpu.vector_store %arg5[%c0_126, %c0_127, %c0_128, %c0_129], %166 {strides = array<i32>} : memref<1x1x12x128xf32, #tpu.memory_space<vmem>>, vector<1x1x12x128xf32>,
    } else {
    }
    %c0 = arith.constant 0 : index
    %c0_1 = arith.constant 0 : index
    %c0_2 = arith.constant 0 : index
    %c0_3 = arith.constant 0 : index
    %3 = vector.load %arg4[%c0, %c0_1, %c0_2, %c0_3] : memref<1x1x2x128xi8, #tpu.memory_space<vmem>>, vector<1x1x2x128xi8>
    %4 = vector.shape_cast %3 : vector<1x1x2x128xi8> to vector<2x128xi8>
    %5 = arith.extsi %4 : vector<2x128xi8> to vector<2x128xi32>
    %c0_4 = arith.constant 0 : index
    %c0_5 = arith.constant 0 : index
    %c0_6 = arith.constant 0 : index
    %c0_7 = arith.constant 0 : index
    %6 = vector.load %arg3[%c0_4, %c0_5, %c0_6, %c0_7] : memref<1x4x2x128xf32, #tpu.memory_space<vmem>>, vector<1x1x2x128xf32>
    %7 = vector.shape_cast %6 : vector<1x1x2x128xf32> to vector<2x128xf32>
    %c0_i32_8 = arith.constant 0 : i32
    %8 = vector.broadcast %c0_i32_8 : i32 to vector<2x128xi32>
    %c0_9 = arith.constant 0 : index
    %c1 = arith.constant 1 : index
    %c0_10 = arith.constant 0 : index
    %c0_11 = arith.constant 0 : index
    %9 = vector.load %arg3[%c0_9, %c1, %c0_10, %c0_11] : memref<1x4x2x128xf32, #tpu.memory_space<vmem>>, vector<1x1x2x128xf32>
    %10 = vector.shape_cast %9 : vector<1x1x2x128xf32> to vector<2x128xf32>
    %11 = arith.cmpf ogt, %10, %7 : vector<2x128xf32>
    %12 = arith.select %11, %10, %7 : vector<2x128xi1>, vector<2x128xf32>
    %c1_i32 = arith.constant 1 : i32
    %13 = vector.broadcast %c1_i32 : i32 to vector<2x128xi32>
    %14 = arith.select %11, %13, %8 : vector<2x128xi1>, vector<2x128xi32>
    %c0_12 = arith.constant 0 : index
    %c2 = arith.constant 2 : index
    %c0_13 = arith.constant 0 : index
    %c0_14 = arith.constant 0 : index
    %15 = vector.load %arg3[%c0_12, %c2, %c0_13, %c0_14] : memref<1x4x2x128xf32, #tpu.memory_space<vmem>>, vector<1x1x2x128xf32>
    %16 = vector.shape_cast %15 : vector<1x1x2x128xf32> to vector<2x128xf32>
    %17 = arith.cmpf ogt, %16, %12 : vector<2x128xf32>
    %18 = arith.select %17, %16, %12 : vector<2x128xi1>, vector<2x128xf32>
    %c2_i32 = arith.constant 2 : i32
    %19 = vector.broadcast %c2_i32 : i32 to vector<2x128xi32>
    %20 = arith.select %17, %19, %14 : vector<2x128xi1>, vector<2x128xi32>
    %c0_15 = arith.constant 0 : index
    %c3 = arith.constant 3 : index
    %c0_16 = arith.constant 0 : index
    %c0_17 = arith.constant 0 : index
    %21 = vector.load %arg3[%c0_15, %c3, %c0_16, %c0_17] : memref<1x4x2x128xf32, #tpu.memory_space<vmem>>, vector<1x1x2x128xf32>
    %22 = vector.shape_cast %21 : vector<1x1x2x128xf32> to vector<2x128xf32>
    %23 = arith.cmpf ogt, %22, %18 : vector<2x128xf32>
    %c3_i32 = arith.constant 3 : i32
    %24 = vector.broadcast %c3_i32 : i32 to vector<2x128xi32>
    %25 = arith.select %23, %24, %20 : vector<2x128xi1>, vector<2x128xi32>
    %c0_i32_18 = arith.constant 0 : i32
    %26 = vector.broadcast %c0_i32_18 : i32 to vector<2x128xi32>
    %27 = arith.cmpi eq, %25, %26 : vector<2x128xi32>
    %c0_i32_19 = arith.constant 0 : i32
    %28 = vector.broadcast %c0_i32_19 : i32 to vector<2x128xi32>
    %29 = arith.cmpi eq, %5, %28 : vector<2x128xi32>
    %30 = arith.andi %27, %29 : vector<2x128xi1>
    %31 = arith.extui %30 : vector<2x128xi1> to vector<2x128xi32>
    %32 = arith.sitofp %31 : vector<2x128xi32> to vector<2x128xf32>
    %cst = arith.constant dense<0.000000e+00> : vector<128xf32>
    %33 = vector.multi_reduction <add>, %32, %cst [0] : vector<2x128xf32> to vector<128xf32>
    %34 = vector.shape_cast %33 : vector<128xf32> to vector<1x128xf32>
    %35 = arith.extui %27 : vector<2x128xi1> to vector<2x128xi32>
    %36 = arith.sitofp %35 : vector<2x128xi32> to vector<2x128xf32>
    %cst_20 = arith.constant dense<0.000000e+00> : vector<128xf32>
    %37 = vector.multi_reduction <add>, %36, %cst_20 [0] : vector<2x128xf32> to vector<128xf32>
    %38 = vector.shape_cast %37 : vector<128xf32> to vector<1x128xf32>
    %39 = arith.extui %29 : vector<2x128xi1> to vector<2x128xi32>
    %40 = arith.sitofp %39 : vector<2x128xi32> to vector<2x128xf32>
    %cst_21 = arith.constant dense<0.000000e+00> : vector<128xf32>
    %41 = vector.multi_reduction <add>, %40, %cst_21 [0] : vector<2x128xf32> to vector<128xf32>
    %42 = vector.shape_cast %41 : vector<128xf32> to vector<1x128xf32>
    %c0_22 = arith.constant 0 : index
    %c0_23 = arith.constant 0 : index
    %c0_24 = arith.constant 0 : index
    %c0_25 = arith.constant 0 : index
    %43 = vector.load %arg5[%c0_22, %c0_23, %c0_24, %c0_25] : memref<1x1x12x128xf32, #tpu.memory_space<vmem>>, vector<1x1x1x128xf32>
    %44 = vector.shape_cast %43 : vector<1x1x1x128xf32> to vector<1x128xf32>
    %45 = arith.addf %44, %34 : vector<1x128xf32>
    %c0_26 = arith.constant 0 : index
    %c0_27 = arith.constant 0 : index
    %c0_28 = arith.constant 0 : index
    %c0_29 = arith.constant 0 : index
    %46 = vector.load %arg5[%c0_26, %c0_27, %c0_28, %c0_29] : memref<1x1x12x128xf32, #tpu.memory_space<vmem>>, vector<1x1x1x128xf32>
    %47 = vector.shape_cast %46 : vector<1x1x1x128xf32> to vector<1x128xf32>
    %48 = vector.shape_cast %45 : vector<1x128xf32> to vector<1x1x1x128xf32>
    tpu.vector_store %arg5[%c0_26, %c0_27, %c0_28, %c0_29], %48 {strides = array<i32>} : memref<1x1x12x128xf32, #tpu.memory_space<vmem>>, vector<1x1x1x128xf32>,
    %c0_30 = arith.constant 0 : index
    %c0_31 = arith.constant 0 : index
    %c4 = arith.constant 4 : index
    %c0_32 = arith.constant 0 : index
    %49 = vector.load %arg5[%c0_30, %c0_31, %c4, %c0_32] : memref<1x1x12x128xf32, #tpu.memory_space<vmem>>, vector<1x1x1x128xf32>
    %50 = vector.shape_cast %49 : vector<1x1x1x128xf32> to vector<1x128xf32>
    %51 = arith.addf %50, %38 : vector<1x128xf32>
    %c0_33 = arith.constant 0 : index
    %c0_34 = arith.constant 0 : index
    %c4_35 = arith.constant 4 : index
    %c0_36 = arith.constant 0 : index
    %52 = vector.load %arg5[%c0_33, %c0_34, %c4_35, %c0_36] : memref<1x1x12x128xf32, #tpu.memory_space<vmem>>, vector<1x1x1x128xf32>
    %53 = vector.shape_cast %52 : vector<1x1x1x128xf32> to vector<1x128xf32>
    %54 = vector.shape_cast %51 : vector<1x128xf32> to vector<1x1x1x128xf32>
    tpu.vector_store %arg5[%c0_33, %c0_34, %c4_35, %c0_36], %54 {strides = array<i32>} : memref<1x1x12x128xf32, #tpu.memory_space<vmem>>, vector<1x1x1x128xf32>,
    %c0_37 = arith.constant 0 : index
    %c0_38 = arith.constant 0 : index
    %c8 = arith.constant 8 : index
    %c0_39 = arith.constant 0 : index
    %55 = vector.load %arg5[%c0_37, %c0_38, %c8, %c0_39] : memref<1x1x12x128xf32, #tpu.memory_space<vmem>>, vector<1x1x1x128xf32>
    %56 = vector.shape_cast %55 : vector<1x1x1x128xf32> to vector<1x128xf32>
    %57 = arith.addf %56, %42 : vector<1x128xf32>
    %c0_40 = arith.constant 0 : index
    %c0_41 = arith.constant 0 : index
    %c8_42 = arith.constant 8 : index
    %c0_43 = arith.constant 0 : index
    %58 = vector.load %arg5[%c0_40, %c0_41, %c8_42, %c0_43] : memref<1x1x12x128xf32, #tpu.memory_space<vmem>>, vector<1x1x1x128xf32>
    %59 = vector.shape_cast %58 : vector<1x1x1x128xf32> to vector<1x128xf32>
    %60 = vector.shape_cast %57 : vector<1x128xf32> to vector<1x1x1x128xf32>
    tpu.vector_store %arg5[%c0_40, %c0_41, %c8_42, %c0_43], %60 {strides = array<i32>} : memref<1x1x12x128xf32, #tpu.memory_space<vmem>>, vector<1x1x1x128xf32>,
    %c1_i32_44 = arith.constant 1 : i32
    %61 = vector.broadcast %c1_i32_44 : i32 to vector<2x128xi32>
    %62 = arith.cmpi eq, %25, %61 : vector<2x128xi32>
    %c1_i32_45 = arith.constant 1 : i32
    %63 = vector.broadcast %c1_i32_45 : i32 to vector<2x128xi32>
    %64 = arith.cmpi eq, %5, %63 : vector<2x128xi32>
    %65 = arith.andi %62, %64 : vector<2x128xi1>
    %66 = arith.extui %65 : vector<2x128xi1> to vector<2x128xi32>
    %67 = arith.sitofp %66 : vector<2x128xi32> to vector<2x128xf32>
    %cst_46 = arith.constant dense<0.000000e+00> : vector<128xf32>
    %68 = vector.multi_reduction <add>, %67, %cst_46 [0] : vector<2x128xf32> to vector<128xf32>
    %69 = vector.shape_cast %68 : vector<128xf32> to vector<1x128xf32>
    %70 = arith.extui %62 : vector<2x128xi1> to vector<2x128xi32>
    %71 = arith.sitofp %70 : vector<2x128xi32> to vector<2x128xf32>
    %cst_47 = arith.constant dense<0.000000e+00> : vector<128xf32>
    %72 = vector.multi_reduction <add>, %71, %cst_47 [0] : vector<2x128xf32> to vector<128xf32>
    %73 = vector.shape_cast %72 : vector<128xf32> to vector<1x128xf32>
    %74 = arith.extui %64 : vector<2x128xi1> to vector<2x128xi32>
    %75 = arith.sitofp %74 : vector<2x128xi32> to vector<2x128xf32>
    %cst_48 = arith.constant dense<0.000000e+00> : vector<128xf32>
    %76 = vector.multi_reduction <add>, %75, %cst_48 [0] : vector<2x128xf32> to vector<128xf32>
    %77 = vector.shape_cast %76 : vector<128xf32> to vector<1x128xf32>
    %c0_49 = arith.constant 0 : index
    %c0_50 = arith.constant 0 : index
    %c1_51 = arith.constant 1 : index
    %c0_52 = arith.constant 0 : index
    %78 = vector.load %arg5[%c0_49, %c0_50, %c1_51, %c0_52] : memref<1x1x12x128xf32, #tpu.memory_space<vmem>>, vector<1x1x1x128xf32>
    %79 = vector.shape_cast %78 : vector<1x1x1x128xf32> to vector<1x128xf32>
    %80 = arith.addf %79, %69 : vector<1x128xf32>
    %c0_53 = arith.constant 0 : index
    %c0_54 = arith.constant 0 : index
    %c1_55 = arith.constant 1 : index
    %c0_56 = arith.constant 0 : index
    %81 = vector.load %arg5[%c0_53, %c0_54, %c1_55, %c0_56] : memref<1x1x12x128xf32, #tpu.memory_space<vmem>>, vector<1x1x1x128xf32>
    %82 = vector.shape_cast %81 : vector<1x1x1x128xf32> to vector<1x128xf32>
    %83 = vector.shape_cast %80 : vector<1x128xf32> to vector<1x1x1x128xf32>
    tpu.vector_store %arg5[%c0_53, %c0_54, %c1_55, %c0_56], %83 {strides = array<i32>} : memref<1x1x12x128xf32, #tpu.memory_space<vmem>>, vector<1x1x1x128xf32>,
    %c0_57 = arith.constant 0 : index
    %c0_58 = arith.constant 0 : index
    %c5 = arith.constant 5 : index
    %c0_59 = arith.constant 0 : index
    %84 = vector.load %arg5[%c0_57, %c0_58, %c5, %c0_59] : memref<1x1x12x128xf32, #tpu.memory_space<vmem>>, vector<1x1x1x128xf32>
    %85 = vector.shape_cast %84 : vector<1x1x1x128xf32> to vector<1x128xf32>
    %86 = arith.addf %85, %73 : vector<1x128xf32>
    %c0_60 = arith.constant 0 : index
    %c0_61 = arith.constant 0 : index
    %c5_62 = arith.constant 5 : index
    %c0_63 = arith.constant 0 : index
    %87 = vector.load %arg5[%c0_60, %c0_61, %c5_62, %c0_63] : memref<1x1x12x128xf32, #tpu.memory_space<vmem>>, vector<1x1x1x128xf32>
    %88 = vector.shape_cast %87 : vector<1x1x1x128xf32> to vector<1x128xf32>
    %89 = vector.shape_cast %86 : vector<1x128xf32> to vector<1x1x1x128xf32>
    tpu.vector_store %arg5[%c0_60, %c0_61, %c5_62, %c0_63], %89 {strides = array<i32>} : memref<1x1x12x128xf32, #tpu.memory_space<vmem>>, vector<1x1x1x128xf32>,
    %c0_64 = arith.constant 0 : index
    %c0_65 = arith.constant 0 : index
    %c9 = arith.constant 9 : index
    %c0_66 = arith.constant 0 : index
    %90 = vector.load %arg5[%c0_64, %c0_65, %c9, %c0_66] : memref<1x1x12x128xf32, #tpu.memory_space<vmem>>, vector<1x1x1x128xf32>
    %91 = vector.shape_cast %90 : vector<1x1x1x128xf32> to vector<1x128xf32>
    %92 = arith.addf %91, %77 : vector<1x128xf32>
    %c0_67 = arith.constant 0 : index
    %c0_68 = arith.constant 0 : index
    %c9_69 = arith.constant 9 : index
    %c0_70 = arith.constant 0 : index
    %93 = vector.load %arg5[%c0_67, %c0_68, %c9_69, %c0_70] : memref<1x1x12x128xf32, #tpu.memory_space<vmem>>, vector<1x1x1x128xf32>
    %94 = vector.shape_cast %93 : vector<1x1x1x128xf32> to vector<1x128xf32>
    %95 = vector.shape_cast %92 : vector<1x128xf32> to vector<1x1x1x128xf32>
    tpu.vector_store %arg5[%c0_67, %c0_68, %c9_69, %c0_70], %95 {strides = array<i32>} : memref<1x1x12x128xf32, #tpu.memory_space<vmem>>, vector<1x1x1x128xf32>,
    %c2_i32_71 = arith.constant 2 : i32
    %96 = vector.broadcast %c2_i32_71 : i32 to vector<2x128xi32>
    %97 = arith.cmpi eq, %25, %96 : vector<2x128xi32>
    %c2_i32_72 = arith.constant 2 : i32
    %98 = vector.broadcast %c2_i32_72 : i32 to vector<2x128xi32>
    %99 = arith.cmpi eq, %5, %98 : vector<2x128xi32>
    %100 = arith.andi %97, %99 : vector<2x128xi1>
    %101 = arith.extui %100 : vector<2x128xi1> to vector<2x128xi32>
    %102 = arith.sitofp %101 : vector<2x128xi32> to vector<2x128xf32>
    %cst_73 = arith.constant dense<0.000000e+00> : vector<128xf32>
    %103 = vector.multi_reduction <add>, %102, %cst_73 [0] : vector<2x128xf32> to vector<128xf32>
    %104 = vector.shape_cast %103 : vector<128xf32> to vector<1x128xf32>
    %105 = arith.extui %97 : vector<2x128xi1> to vector<2x128xi32>
    %106 = arith.sitofp %105 : vector<2x128xi32> to vector<2x128xf32>
    %cst_74 = arith.constant dense<0.000000e+00> : vector<128xf32>
    %107 = vector.multi_reduction <add>, %106, %cst_74 [0] : vector<2x128xf32> to vector<128xf32>
    %108 = vector.shape_cast %107 : vector<128xf32> to vector<1x128xf32>
    %109 = arith.extui %99 : vector<2x128xi1> to vector<2x128xi32>
    %110 = arith.sitofp %109 : vector<2x128xi32> to vector<2x128xf32>
    %cst_75 = arith.constant dense<0.000000e+00> : vector<128xf32>
    %111 = vector.multi_reduction <add>, %110, %cst_75 [0] : vector<2x128xf32> to vector<128xf32>
    %112 = vector.shape_cast %111 : vector<128xf32> to vector<1x128xf32>
    %c0_76 = arith.constant 0 : index
    %c0_77 = arith.constant 0 : index
    %c2_78 = arith.constant 2 : index
    %c0_79 = arith.constant 0 : index
    %113 = vector.load %arg5[%c0_76, %c0_77, %c2_78, %c0_79] : memref<1x1x12x128xf32, #tpu.memory_space<vmem>>, vector<1x1x1x128xf32>
    %114 = vector.shape_cast %113 : vector<1x1x1x128xf32> to vector<1x128xf32>
    %115 = arith.addf %114, %104 : vector<1x128xf32>
    %c0_80 = arith.constant 0 : index
    %c0_81 = arith.constant 0 : index
    %c2_82 = arith.constant 2 : index
    %c0_83 = arith.constant 0 : index
    %116 = vector.load %arg5[%c0_80, %c0_81, %c2_82, %c0_83] : memref<1x1x12x128xf32, #tpu.memory_space<vmem>>, vector<1x1x1x128xf32>
    %117 = vector.shape_cast %116 : vector<1x1x1x128xf32> to vector<1x128xf32>
    %118 = vector.shape_cast %115 : vector<1x128xf32> to vector<1x1x1x128xf32>
    tpu.vector_store %arg5[%c0_80, %c0_81, %c2_82, %c0_83], %118 {strides = array<i32>} : memref<1x1x12x128xf32, #tpu.memory_space<vmem>>, vector<1x1x1x128xf32>,
    %c0_84 = arith.constant 0 : index
    %c0_85 = arith.constant 0 : index
    %c6 = arith.constant 6 : index
    %c0_86 = arith.constant 0 : index
    %119 = vector.load %arg5[%c0_84, %c0_85, %c6, %c0_86] : memref<1x1x12x128xf32, #tpu.memory_space<vmem>>, vector<1x1x1x128xf32>
    %120 = vector.shape_cast %119 : vector<1x1x1x128xf32> to vector<1x128xf32>
    %121 = arith.addf %120, %108 : vector<1x128xf32>
    %c0_87 = arith.constant 0 : index
    %c0_88 = arith.constant 0 : index
    %c6_89 = arith.constant 6 : index
    %c0_90 = arith.constant 0 : index
    %122 = vector.load %arg5[%c0_87, %c0_88, %c6_89, %c0_90] : memref<1x1x12x128xf32, #tpu.memory_space<vmem>>, vector<1x1x1x128xf32>
    %123 = vector.shape_cast %122 : vector<1x1x1x128xf32> to vector<1x128xf32>
    %124 = vector.shape_cast %121 : vector<1x128xf32> to vector<1x1x1x128xf32>
    tpu.vector_store %arg5[%c0_87, %c0_88, %c6_89, %c0_90], %124 {strides = array<i32>} : memref<1x1x12x128xf32, #tpu.memory_space<vmem>>, vector<1x1x1x128xf32>,
    %c0_91 = arith.constant 0 : index
    %c0_92 = arith.constant 0 : index
    %c10 = arith.constant 10 : index
    %c0_93 = arith.constant 0 : index
    %125 = vector.load %arg5[%c0_91, %c0_92, %c10, %c0_93] : memref<1x1x12x128xf32, #tpu.memory_space<vmem>>, vector<1x1x1x128xf32>
    %126 = vector.shape_cast %125 : vector<1x1x1x128xf32> to vector<1x128xf32>
    %127 = arith.addf %126, %112 : vector<1x128xf32>
    %c0_94 = arith.constant 0 : index
    %c0_95 = arith.constant 0 : index
    %c10_96 = arith.constant 10 : index
    %c0_97 = arith.constant 0 : index
    %128 = vector.load %arg5[%c0_94, %c0_95, %c10_96, %c0_97] : memref<1x1x12x128xf32, #tpu.memory_space<vmem>>, vector<1x1x1x128xf32>
    %129 = vector.shape_cast %128 : vector<1x1x1x128xf32> to vector<1x128xf32>
    %130 = vector.shape_cast %127 : vector<1x128xf32> to vector<1x1x1x128xf32>
    tpu.vector_store %arg5[%c0_94, %c0_95, %c10_96, %c0_97], %130 {strides = array<i32>} : memref<1x1x12x128xf32, #tpu.memory_space<vmem>>, vector<1x1x1x128xf32>,
    %c3_i32_98 = arith.constant 3 : i32
    %131 = vector.broadcast %c3_i32_98 : i32 to vector<2x128xi32>
    %132 = arith.cmpi eq, %25, %131 : vector<2x128xi32>
    %c3_i32_99 = arith.constant 3 : i32
    %133 = vector.broadcast %c3_i32_99 : i32 to vector<2x128xi32>
    %134 = arith.cmpi eq, %5, %133 : vector<2x128xi32>
    %135 = arith.andi %132, %134 : vector<2x128xi1>
    %136 = arith.extui %135 : vector<2x128xi1> to vector<2x128xi32>
    %137 = arith.sitofp %136 : vector<2x128xi32> to vector<2x128xf32>
    %cst_100 = arith.constant dense<0.000000e+00> : vector<128xf32>
    %138 = vector.multi_reduction <add>, %137, %cst_100 [0] : vector<2x128xf32> to vector<128xf32>
    %139 = vector.shape_cast %138 : vector<128xf32> to vector<1x128xf32>
    %140 = arith.extui %132 : vector<2x128xi1> to vector<2x128xi32>
    %141 = arith.sitofp %140 : vector<2x128xi32> to vector<2x128xf32>
    %cst_101 = arith.constant dense<0.000000e+00> : vector<128xf32>
    %142 = vector.multi_reduction <add>, %141, %cst_101 [0] : vector<2x128xf32> to vector<128xf32>
    %143 = vector.shape_cast %142 : vector<128xf32> to vector<1x128xf32>
    %144 = arith.extui %134 : vector<2x128xi1> to vector<2x128xi32>
    %145 = arith.sitofp %144 : vector<2x128xi32> to vector<2x128xf32>
    %cst_102 = arith.constant dense<0.000000e+00> : vector<128xf32>
    %146 = vector.multi_reduction <add>, %145, %cst_102 [0] : vector<2x128xf32> to vector<128xf32>
    %147 = vector.shape_cast %146 : vector<128xf32> to vector<1x128xf32>
    %c0_103 = arith.constant 0 : index
    %c0_104 = arith.constant 0 : index
    %c3_105 = arith.constant 3 : index
    %c0_106 = arith.constant 0 : index
    %148 = vector.load %arg5[%c0_103, %c0_104, %c3_105, %c0_106] : memref<1x1x12x128xf32, #tpu.memory_space<vmem>>, vector<1x1x1x128xf32>
    %149 = vector.shape_cast %148 : vector<1x1x1x128xf32> to vector<1x128xf32>
    %150 = arith.addf %149, %139 : vector<1x128xf32>
    %c0_107 = arith.constant 0 : index
    %c0_108 = arith.constant 0 : index
    %c3_109 = arith.constant 3 : index
    %c0_110 = arith.constant 0 : index
    %151 = vector.load %arg5[%c0_107, %c0_108, %c3_109, %c0_110] : memref<1x1x12x128xf32, #tpu.memory_space<vmem>>, vector<1x1x1x128xf32>
    %152 = vector.shape_cast %151 : vector<1x1x1x128xf32> to vector<1x128xf32>
    %153 = vector.shape_cast %150 : vector<1x128xf32> to vector<1x1x1x128xf32>
    tpu.vector_store %arg5[%c0_107, %c0_108, %c3_109, %c0_110], %153 {strides = array<i32>} : memref<1x1x12x128xf32, #tpu.memory_space<vmem>>, vector<1x1x1x128xf32>,
    %c0_111 = arith.constant 0 : index
    %c0_112 = arith.constant 0 : index
    %c7 = arith.constant 7 : index
    %c0_113 = arith.constant 0 : index
    %154 = vector.load %arg5[%c0_111, %c0_112, %c7, %c0_113] : memref<1x1x12x128xf32, #tpu.memory_space<vmem>>, vector<1x1x1x128xf32>
    %155 = vector.shape_cast %154 : vector<1x1x1x128xf32> to vector<1x128xf32>
    %156 = arith.addf %155, %143 : vector<1x128xf32>
    %c0_114 = arith.constant 0 : index
    %c0_115 = arith.constant 0 : index
    %c7_116 = arith.constant 7 : index
    %c0_117 = arith.constant 0 : index
    %157 = vector.load %arg5[%c0_114, %c0_115, %c7_116, %c0_117] : memref<1x1x12x128xf32, #tpu.memory_space<vmem>>, vector<1x1x1x128xf32>
    %158 = vector.shape_cast %157 : vector<1x1x1x128xf32> to vector<1x128xf32>
    %159 = vector.shape_cast %156 : vector<1x128xf32> to vector<1x1x1x128xf32>
    tpu.vector_store %arg5[%c0_114, %c0_115, %c7_116, %c0_117], %159 {strides = array<i32>} : memref<1x1x12x128xf32, #tpu.memory_space<vmem>>, vector<1x1x1x128xf32>,
    %c0_118 = arith.constant 0 : index
    %c0_119 = arith.constant 0 : index
    %c11 = arith.constant 11 : index
    %c0_120 = arith.constant 0 : index
    %160 = vector.load %arg5[%c0_118, %c0_119, %c11, %c0_120] : memref<1x1x12x128xf32, #tpu.memory_space<vmem>>, vector<1x1x1x128xf32>
    %161 = vector.shape_cast %160 : vector<1x1x1x128xf32> to vector<1x128xf32>
    %162 = arith.addf %161, %147 : vector<1x128xf32>
    %c0_121 = arith.constant 0 : index
    %c0_122 = arith.constant 0 : index
    %c11_123 = arith.constant 11 : index
    %c0_124 = arith.constant 0 : index
    %163 = vector.load %arg5[%c0_121, %c0_122, %c11_123, %c0_124] : memref<1x1x12x128xf32, #tpu.memory_space<vmem>>, vector<1x1x1x128xf32>
    %164 = vector.shape_cast %163 : vector<1x1x1x128xf32> to vector<1x128xf32>
    %165 = vector.shape_cast %162 : vector<1x128xf32> to vector<1x1x1x128xf32>
    tpu.vector_store %arg5[%c0_121, %c0_122, %c11_123, %c0_124], %165 {strides = array<i32>} : memref<1x1x12x128xf32, #tpu.memory_space<vmem>>, vector<1x1x1x128xf32>,
    return
  }
  func.func @transform_0(%arg0: i32, %arg1: i32, %arg2: i32) -> (i32, i32, i32, i32) {
    %c1_i32 = arith.constant 1 : i32
    %0 = arith.muli %arg1, %c1_i32 : i32
    %1 = arith.addi %0, %arg2 : i32
    %c0_i32 = arith.constant 0 : i32
    %c0_i32_0 = arith.constant 0 : i32
    %c0_i32_1 = arith.constant 0 : i32
    return %arg0, %c0_i32, %1, %c0_i32_0 : i32, i32, i32, i32
  }
  func.func @transform_1(%arg0: i32, %arg1: i32, %arg2: i32) -> (i32, i32, i32, i32) {
    %c1_i32 = arith.constant 1 : i32
    %0 = arith.muli %arg1, %c1_i32 : i32
    %1 = arith.addi %0, %arg2 : i32
    %c0_i32 = arith.constant 0 : i32
    %c0_i32_0 = arith.constant 0 : i32
    %c0_i32_1 = arith.constant 0 : i32
    return %arg0, %c0_i32, %1, %c0_i32_0 : i32, i32, i32, i32
  }
  func.func @transform_2(%arg0: i32, %arg1: i32, %arg2: i32) -> (i32, i32, i32, i32) {
    %c0_i32 = arith.constant 0 : i32
    %c0_i32_0 = arith.constant 0 : i32
    %c0_i32_1 = arith.constant 0 : i32
    return %arg0, %arg1, %c0_i32, %c0_i32_0 : i32, i32, i32, i32
  }
}

</mosaic_0001>

<llo_original>
// kernel: tpu_custom_call.1
$region0: #{tpu_custom_call.1}
  #allocation0 [shape = 'u32[]', space=smem, size = 0x4, offset = 0x4, fixed_abs, tag = 'smem constant byte address 0x4 - core index']
  #allocation1 [shape = 'u32[144,128]{1,0:T(1,128)}', space=vmem, size = 0x12000, scoped, tag = 'internal scratch']
  %s0 = inlined_call_operand.hbm [shape: f32[2,4,2,128], index: 0, kind: input, shape index: {}]
  %s1 = inlined_call_operand.hbm [shape: s8[2,1,2,128], index: 1, kind: input, shape index: {}]
  %s2 = inlined_call_operand.vmem [shape: f32[2,1,12,128], index: 2, kind: output, shape index: {}]
  %s3 = sld [smem:[#allocation0]]
  $region53: #{tpu_custom_call.1} parent=0
    _
  %s5 = ssub.s32 1, %s3
  %s6 = scalar_select 0, %s5, %s3
  $region1: #{tpu_custom_call.1} parent=0
    #allocation2 [shape = 'u8[8192]{0}', space=vmem, size = 0x2000, scoped, tag = 'input window, operand 0']
    #allocation3 [shape = 's32[2]{0}', space=sflag, size = 0x8, scoped, tag = 'scoped memory for tpu_custom_call.1']
    #allocation4 [shape = 'u8[1024]{0}', space=vmem, size = 0x400, scoped, tag = 'input window, operand 1']
    #allocation5 [shape = 's32[2]{0}', space=sflag, size = 0x8, scoped, tag = 'scoped memory for tpu_custom_call.1']
    %7 = vsyncpa [#allocation3], 0
    %s8 = scalar_lea.sflag [#allocation3], 1
    %9 = vsyncpa %s8, 0
    %10 = vsyncpa [#allocation5], 0
    %s11 = scalar_lea.sflag [#allocation5], 1
    %12 = vsyncpa %s11, 0
    loop: start=0, step=1, limit=4
    $region2: #{tpu_custom_call.1} parent=1 // loop_pre_header
      _
    $region3: #{tpu_custom_call.1} parent=1 // loop_header
      %s14 = sphi 0, %s18
      %p15 = scmp.ge.s32.totalorder %s14, 4
      %s21 = sphi 0, %s40
      %s22 = sphi 0, %s36
      %s23 = sphi 0, %s32
      %s24 = sphi 0, %s21
      %s25 = sphi 0, %s22
      %s26 = sphi 0, %s23
      %s27 = sphi 0, %s24
      %s28 = sphi 0, %s25
      %s29 = sphi 0, %s26
      %s47 = sphi 0, %s49
      %s50 = sphi 0, %s47
      %s51 = sphi 0, %s50
      %s67 = sphi 0, %s51
      %s77 = sphi 0, %s79
      %s80 = sphi 0, %s77
      %s81 = sphi 0, %s80
      %s97 = sphi 0, %s81
      %s105 = sphi 0, %s107
      %s108 = sphi 0, %s105
      %s109 = sphi 0, %s108
      %s125 = sphi 0, %s109
    $region4: #{tpu_custom_call.1} parent=1 // loop_header_branch
      %17 = sbr.rel (%p15) target = $region8
    $region5: #{tpu_custom_call.1} parent=1 // loop_body
      %s19 = ssub.s32 %s14, 1
      %s20 = ssub.s32 %s14, 2
      %s30 = sadd.s32 1, %s23
      %p31 = scmp.ge.s32.totalorder %s30, 1
      %s32 = scalar_select %p31, 0, %s30
      %s33 = sadd.s32 1, %s22
      %s34 = scalar_select %p31, %s33, %s22
      %p35 = scmp.ge.s32.totalorder %s34, 1
      %s36 = scalar_select %p35, 0, %s34
      %s37 = sadd.s32 1, %s21
      %s38 = scalar_select %p35, %s37, %s21
      %p39 = scmp.ge.s32.totalorder %s38, 2
      %s40 = scalar_select %p39, 0, %s38
      %s41 = sadd.s32 %s22, %s23
      %s42 = sadd.s32 %s36, %s32
      %s43 = ssub.s32 %s21, %s40
      %s44 = ssub.s32 %s41, %s42
      %s45 = sor.u32 %s43, %s44
      %p46 = scmp.eq.s32.totalorder %s45, 0
      %s48 = sadd.s32 %s47, 1
      %s49 = scalar_select %p46, %s47, %s48
      %p52 = pneg %p46
      %p53 = scmp.eq.s32.totalorder %s14, 1
      %p54 = por %p52, %p53
      %p55 = scmp.ne.s32.totalorder %s47, %s50
      %p56 = scmp.eq.s32.totalorder %s14, 0
      %p57 = por %p55, %p56
      %p58 = scmp.ne.s32.totalorder %s47, %s50
      %p59 = scmp.eq.s32.totalorder %s19, 1
      %p60 = por %p58, %p59
      %p61 = scmp.ne.s32.totalorder %s50, %s51
      %p62 = scmp.eq.s32.totalorder %s19, 0
      %p63 = por %p61, %p62
      %p64 = scmp.ne.s32.totalorder %s50, %s51
      %p65 = scmp.eq.s32.totalorder %s20, 1
      %p66 = por %p64, %p65
      %p68 = scmp.ne.s32.totalorder %s51, %s67
      %p69 = scmp.eq.s32.totalorder %s20, 0
      %p70 = por %p68, %p69
      %s71 = sadd.s32 %s22, %s23
      %s72 = sadd.s32 %s36, %s32
      %s73 = ssub.s32 %s21, %s40
      %s74 = ssub.s32 %s71, %s72
      %s75 = sor.u32 %s73, %s74
      %p76 = scmp.eq.s32.totalorder %s75, 0
      %s78 = sadd.s32 %s77, 1
      %s79 = scalar_select %p76, %s77, %s78
      %p82 = pneg %p76
      %p83 = scmp.eq.s32.totalorder %s14, 1
      %p84 = por %p82, %p83
      %p85 = scmp.ne.s32.totalorder %s77, %s80
      %p86 = scmp.eq.s32.totalorder %s14, 0
      %p87 = por %p85, %p86
      %p88 = scmp.ne.s32.totalorder %s77, %s80
      %p89 = scmp.eq.s32.totalorder %s19, 1
      %p90 = por %p88, %p89
      %p91 = scmp.ne.s32.totalorder %s80, %s81
      %p92 = scmp.eq.s32.totalorder %s19, 0
      %p93 = por %p91, %p92
      %p94 = scmp.ne.s32.totalorder %s80, %s81
      %p95 = scmp.eq.s32.totalorder %s20, 1
      %p96 = por %p94, %p95
      %p98 = scmp.ne.s32.totalorder %s81, %s97
      %p99 = scmp.eq.s32.totalorder %s20, 0
      %p100 = por %p98, %p99
      %s101 = ssub.s32 %s21, %s40
      %s102 = ssub.s32 %s22, %s36
      %s103 = sor.u32 %s101, %s102
      %p104 = scmp.eq.s32.totalorder %s103, 0
      %s106 = sadd.s32 %s105, 1
      %s107 = scalar_select %p104, %s105, %s106
      %p110 = pneg %p104
      %p111 = scmp.eq.s32.totalorder %s14, 1
      %p112 = por %p110, %p111
      %p113 = scmp.ne.s32.totalorder %s105, %s108
      %p114 = scmp.eq.s32.totalorder %s14, 0
      %p115 = por %p113, %p114
      %p116 = scmp.ne.s32.totalorder %s105, %s108
      %p117 = scmp.eq.s32.totalorder %s19, 1
      %p118 = por %p116, %p117
      %p119 = scmp.ne.s32.totalorder %s108, %s109
      %p120 = scmp.eq.s32.totalorder %s19, 0
      %p121 = por %p119, %p120
      %p122 = scmp.ne.s32.totalorder %s108, %s109
      %p123 = scmp.eq.s32.totalorder %s20, 1
      %p124 = por %p122, %p123
      %p126 = scmp.ne.s32.totalorder %s109, %s125
      %p127 = scmp.eq.s32.totalorder %s20, 0
      %p128 = por %p126, %p127
      %p129 = scmp.le.s32.totalorder 1, %s14
      %p130 = scmp.lt.s32.totalorder %s14, 3
      %p131 = pnand %p129, %p130
      %p132 = pneg %p131
      // Predicated region
      $region9: #{tpu_custom_call.1} parent=5 // pred_check
        _
      $region10: #{tpu_custom_call.1} parent=5 // pred_check_branch
        %134 = sbr.rel (%p131) target = $region12
      $region11: #{tpu_custom_call.1} parent=5 // pred_region
        %s135 = ssub.s32 %s14, 1
      $region12: #{tpu_custom_call.1} parent=5 // pred_fallthru
        _
      %p136 = scmp.lt.s32.totalorder %s14, 2
      // Predicated region
      $region13: #{tpu_custom_call.1} parent=5 // pred_check
        %p137 = pneg %p136
      $region14: #{tpu_custom_call.1} parent=5 // pred_check_branch
        %139 = sbr.rel (%p137) target = $region16
      $region15: #{tpu_custom_call.1} parent=5 // pred_region
        // Predicated region
        $region17: #{tpu_custom_call.1} parent=15 // pred_check
          %p140 = pneg %p57
        $region18: #{tpu_custom_call.1} parent=15 // pred_check_branch
          %142 = sbr.rel (%p140) target = $region20
        $region19: #{tpu_custom_call.1} parent=15 // pred_region
          %s143 = sand.u32 %s47, 1
          %s144 = scalar_lea.sflag [#allocation3], %s143
          %s145 = sand.u32 %s47, 1
          %s146 = smul.addr %s145, 8
          %s147 = scalar_lea.vmem [#allocation2], %s146
          %s148 = sadd.s32 %s22, %s23
          %s150 = ssub.s32 128, 128
          %151 = vsyncadd %s144, %s150
          %s152 = smul.addr %s21, 4
          %s153 = sadd.s32 %s148, %s152
          %s154 = smul.addr %s153, 32
          %s155 = scalar_lea.hbm %s0, %s154
          %s156 = sshll.u32 %s147, 4
          %s157 = int_to_ptr.vmem [resolvable:$true] %s156
          %162 = dma.hbm_to_vmem [thread:$0]  %s155, 128, %s157, %s144, 32, 32, 2
        $region20: #{tpu_custom_call.1} parent=15 // pred_fallthru
          _
        // Predicated region
        $region21: #{tpu_custom_call.1} parent=15 // pred_check
          %p163 = pneg %p87
        $region22: #{tpu_custom_call.1} parent=15 // pred_check_branch
          %165 = sbr.rel (%p163) target = $region24
        $region23: #{tpu_custom_call.1} parent=15 // pred_region
          %s166 = sand.u32 %s77, 1
          %s167 = scalar_lea.sflag [#allocation5], %s166
          %s168 = sand.u32 %s77, 1
          %s169 = scalar_lea.vmem [#allocation4], %s168
          %s170 = sadd.s32 %s22, %s23
          %s172 = ssub.s32 16, 16
          %173 = vsyncadd %s167, %s172
          %s174 = sadd.s32 %s170, %s21
          %s175 = smul.addr %s174, 16
          %s176 = scalar_lea.hbm %s1, %s175
          %s178 = sshll.u32 %s169, 4
          %s179 = int_to_ptr.vmem [resolvable:$true] %s178
          %181 = dma.hbm_to_vmem [thread:$0]  %s176, 16, %s179, %s167
        $region24: #{tpu_custom_call.1} parent=15 // pred_fallthru
          _
      $region16: #{tpu_custom_call.1} parent=5 // pred_fallthru
        _
      %p182 = scmp.le.s32.totalorder 1, %s14
      %p183 = scmp.lt.s32.totalorder %s14, 3
      %p184 = pnand %p182, %p183
      %p185 = pneg %p184
      // Predicated region
      $region25: #{tpu_custom_call.1} parent=5 // pred_check
        _
      $region26: #{tpu_custom_call.1} parent=5 // pred_check_branch
        %187 = sbr.rel (%p184) target = $region28
      $region27: #{tpu_custom_call.1} parent=5 // pred_region
        %s188 = ssub.s32 %s14, 1
        %s189 = sand.u32 %s50, 1
        %s190 = scalar_lea.sflag [#allocation3], %s189
        %s191 = sand.u32 %s50, 1
        %s192 = smul.addr %s191, 8
        %s193 = scalar_lea.vmem [#allocation2], %s192
        // Predicated region
        $region29: #{tpu_custom_call.1} parent=27 // pred_check
          %p194 = pneg %p63
        $region30: #{tpu_custom_call.1} parent=27 // pred_check_branch
          %196 = sbr.rel (%p194) target = $region32
        $region31: #{tpu_custom_call.1} parent=27 // pred_region
          %197 = dma.done %s190, 128
        $region32: #{tpu_custom_call.1} parent=27 // pred_fallthru
          _
        %s198 = sand.u32 %s80, 1
        %s199 = scalar_lea.sflag [#allocation5], %s198
        %s200 = sand.u32 %s80, 1
        %s201 = scalar_lea.vmem [#allocation4], %s200
        // Predicated region
        $region33: #{tpu_custom_call.1} parent=27 // pred_check
          %p202 = pneg %p93
        $region34: #{tpu_custom_call.1} parent=27 // pred_check_branch
          %204 = sbr.rel (%p202) target = $region36
        $region35: #{tpu_custom_call.1} parent=27 // pred_region
          %205 = dma.done %s199, 16
        $region36: #{tpu_custom_call.1} parent=27 // pred_fallthru
          _
        %s206 = sand.u32 %s50, 1
        %s207 = scalar_lea.sflag [#allocation3], %s206
        %s208 = sand.u32 %s50, 1
        %s209 = smul.addr %s208, 8
        %s210 = scalar_lea.vmem [#allocation2], %s209
        %p211 = pneg %p63
        %p212 = pneg %p60
        %s213 = sand.u32 %s80, 1
        %s214 = scalar_lea.sflag [#allocation5], %s213
        %s215 = sand.u32 %s80, 1
        %s216 = scalar_lea.vmem [#allocation4], %s215
        %p217 = pneg %p93
        %p218 = pneg %p90
        %p219 = pneg %p121
        %p220 = pneg %p118
        %p221 = scmp.lt.s32.totalorder %s24, 1
        %s222 = scalar_select %p221, %s24, 1
        %p223 = scmp.lt.s32.totalorder %s25, 0
        %s224 = scalar_select %p223, %s25, 0
        %s225 = smul.addr %s224, 2
        %s226 = smul.addr %s222, 2
        %s227 = sadd.s32 %s225, %s226
        %s228 = smul.addr %s227, 8
        %s229 = scalar_lea.vmem %s2, %s228
        %s230 = sadd.s32 %s25, %s26
        %s231 = sadd.s32 %s25, %s26
        %p232 = scmp.lt.s32.totalorder %s24, 1
        %s233 = scalar_select %p232, %s24, 1
        %p234 = scmp.lt.s32.totalorder %s25, 0
        %s235 = scalar_select %p234, %s25, 0
        %s236 = smul.addr %s235, 2
        %s237 = smul.addr %s233, 2
        %s238 = sadd.s32 %s236, %s237
        %s239 = smul.addr %s238, 8
        %s240 = scalar_lea.vmem %s2, %s239
        %p241 = scmp.eq.s32.totalorder %s26, 0
        // Predicated region
        $region37: #{tpu_custom_call.1} parent=27 // pred_check
          %p242 = pneg %p241
        $region38: #{tpu_custom_call.1} parent=27 // pred_check_branch
          %244 = sbr.rel (%p242) target = $region40
        $region39: #{tpu_custom_call.1} parent=27 // pred_region
          %245 = vst [vmem:[%s240] sm:$0xff] 0.0
          %246 = vst [vmem:[%s240 + $0x8] sm:$0xf] 0.0
        $region40: #{tpu_custom_call.1} parent=27 // pred_fallthru
          _
        %v247 = vld [vmem:[%s201] sm:$0x1]
        %v248 = vunpack.c.0.s8 %v247
        %v249 = vld [vmem:[%s193] sm:$0x3]
        %s250 = scalar_lea.vmem %s193, 2 [#allocation2]
        %v251 = vld [vmem:[%s250] sm:$0x3]
        %vm252 = vcmp.gt.f32.partialorder %v251, %v249
        %v253 = vsel %vm252, %v251, %v249
        %v254 = vsel %vm252, 1, 0
        %s255 = scalar_lea.vmem %s193, 4 [#allocation2]
        %v256 = vld [vmem:[%s255] sm:$0x3]
        %vm257 = vcmp.gt.f32.partialorder %v256, %v253
        %v258 = vsel %vm257, %v256, %v253
        %v259 = vsel %vm257, 2, %v254
        %s260 = scalar_lea.vmem %s193, 6 [#allocation2]
        %v261 = vld [vmem:[%s260] sm:$0x3]
        %vm262 = vcmp.gt.f32.partialorder %v261, %v258
        %v263 = vsel %vm262, 3, %v259
        %vm264 = vcmp.eq.s32.totalorder %v263, 0
        %vm265 = vcmp.eq.s32.totalorder %v248, 0
        %vm266 = vmand %vm264, %vm265
        %v267 = vsel %vm266, 1, 0
        %v268 = vcvt.s32.f32 %v267
        %vm269 = vcmask 1041408
        %v270 = vsel %vm269, %v268, 0.0
        %v271 = vrot.slane %v270, 4
        %v272 = vadd.f32 %v270, %v271
        %v273 = vrot.slane %v272, 2
        %v274 = vadd.f32 %v272, %v273
        %v275 = vrot.slane %v274, 1
        %v276 = vadd.f32 %v274, %v275
        %v277 = vsel %vm264, 1, 0
        %v278 = vcvt.s32.f32 %v277
        %v279 = vsel %vm269, %v278, 0.0
        %v280 = vrot.slane %v279, 4
        %v281 = vadd.f32 %v279, %v280
        %v282 = vrot.slane %v281, 2
        %v283 = vadd.f32 %v281, %v282
        %v284 = vrot.slane %v283, 1
        %v285 = vadd.f32 %v283, %v284
        %v286 = vsel %vm265, 1, 0
        %v287 = vcvt.s32.f32 %v286
        %v288 = vsel %vm269, %v287, 0.0
        %v289 = vrot.slane %v288, 4
        %v290 = vadd.f32 %v288, %v289
        %v291 = vrot.slane %v290, 2
        %v292 = vadd.f32 %v290, %v291
        %v293 = vrot.slane %v292, 1
        %v294 = vadd.f32 %v292, %v293
        %v295 = vld [vmem:[%s240] sm:$0x1]
        %v296 = vadd.f32 %v295, %v276
        %297 = vst [vmem:[%s240] sm:$0x1] %v296
        %v298 = vld [vmem:[%s240 + $0x4] sm:$0x1]
        %v299 = vadd.f32 %v298, %v285
        %300 = vst [vmem:[%s240 + $0x4] sm:$0x1] %v299
        %v301 = vld [vmem:[%s240 + $0x8] sm:$0x1]
        %v302 = vadd.f32 %v301, %v294
        %303 = vst [vmem:[%s240 + $0x8] sm:$0x1] %v302
        %vm304 = vcmp.eq.s32.totalorder %v263, 1
        %vm305 = vcmp.eq.s32.totalorder %v248, 1
        %vm306 = vmand %vm304, %vm305
        %v307 = vsel %vm306, 1, 0
        %v308 = vcvt.s32.f32 %v307
        %v309 = vsel %vm269, %v308, 0.0
        %v310 = vrot.slane %v309, 4
        %v311 = vadd.f32 %v309, %v310
        %v312 = vrot.slane %v311, 2
        %v313 = vadd.f32 %v311, %v312
        %v314 = vrot.slane %v313, 1
        %v315 = vadd.f32 %v313, %v314
        %v316 = vsel %vm304, 1, 0
        %v317 = vcvt.s32.f32 %v316
        %v318 = vsel %vm269, %v317, 0.0
        %v319 = vrot.slane %v318, 4
        %v320 = vadd.f32 %v318, %v319
        %v321 = vrot.slane %v320, 2
        %v322 = vadd.f32 %v320, %v321
        %v323 = vrot.slane %v322, 1
        %v324 = vadd.f32 %v322, %v323
        %v325 = vsel %vm305, 1, 0
        %v326 = vcvt.s32.f32 %v325
        %v327 = vsel %vm269, %v326, 0.0
        %v328 = vrot.slane %v327, 4
        %v329 = vadd.f32 %v327, %v328
        %v330 = vrot.slane %v329, 2
        %v331 = vadd.f32 %v329, %v330
        %v332 = vrot.slane %v331, 1
        %v333 = vadd.f32 %v331, %v332
        %v334 = vld [vmem:[%s240 + $0x1] sm:$0x1]
        %v335 = vadd.f32 %v334, %v315
        %336 = vst [vmem:[%s240 + $0x1] sm:$0x1] %v335
        %v337 = vld [vmem:[%s240 + $0x5] sm:$0x1]
        %v338 = vadd.f32 %v337, %v324
        %339 = vst [vmem:[%s240 + $0x5] sm:$0x1] %v338
        %v340 = vld [vmem:[%s240 + $0x9] sm:$0x1]
        %v341 = vadd.f32 %v340, %v333
        %342 = vst [vmem:[%s240 + $0x9] sm:$0x1] %v341
        %vm343 = vcmp.eq.s32.totalorder %v263, 2
        %vm344 = vcmp.eq.s32.totalorder %v248, 2
        %vm345 = vmand %vm343, %vm344
        %v346 = vsel %vm345, 1, 0
        %v347 = vcvt.s32.f32 %v346
        %v348 = vsel %vm269, %v347, 0.0
        %v349 = vrot.slane %v348, 4
        %v350 = vadd.f32 %v348, %v349
        %v351 = vrot.slane %v350, 2
        %v352 = vadd.f32 %v350, %v351
        %v353 = vrot.slane %v352, 1
        %v354 = vadd.f32 %v352, %v353
        %v355 = vsel %vm343, 1, 0
        %v356 = vcvt.s32.f32 %v355
        %v357 = vsel %vm269, %v356, 0.0
        %v358 = vrot.slane %v357, 4
        %v359 = vadd.f32 %v357, %v358
        %v360 = vrot.slane %v359, 2
        %v361 = vadd.f32 %v359, %v360
        %v362 = vrot.slane %v361, 1
        %v363 = vadd.f32 %v361, %v362
        %v364 = vsel %vm344, 1, 0
        %v365 = vcvt.s32.f32 %v364
        %v366 = vsel %vm269, %v365, 0.0
        %v367 = vrot.slane %v366, 4
        %v368 = vadd.f32 %v366, %v367
        %v369 = vrot.slane %v368, 2
        %v370 = vadd.f32 %v368, %v369
        %v371 = vrot.slane %v370, 1
        %v372 = vadd.f32 %v370, %v371
        %v373 = vld [vmem:[%s240 + $0x2] sm:$0x1]
        %v374 = vadd.f32 %v373, %v354
        %375 = vst [vmem:[%s240 + $0x2] sm:$0x1] %v374
        %v376 = vld [vmem:[%s240 + $0x6] sm:$0x1]
        %v377 = vadd.f32 %v376, %v363
        %378 = vst [vmem:[%s240 + $0x6] sm:$0x1] %v377
        %v379 = vld [vmem:[%s240 + $0xa] sm:$0x1]
        %v380 = vadd.f32 %v379, %v372
        %381 = vst [vmem:[%s240 + $0xa] sm:$0x1] %v380
        %vm382 = vcmp.eq.s32.totalorder %v263, 3
        %vm383 = vcmp.eq.s32.totalorder %v248, 3
        %vm384 = vmand %vm382, %vm383
        %v385 = vsel %vm384, 1, 0
        %v386 = vcvt.s32.f32 %v385
        %v387 = vsel %vm269, %v386, 0.0
        %v388 = vrot.slane %v387, 4
        %v389 = vadd.f32 %v387, %v388
        %v390 = vrot.slane %v389, 2
        %v391 = vadd.f32 %v389, %v390
        %v392 = vrot.slane %v391, 1
        %v393 = vadd.f32 %v391, %v392
        %v394 = vsel %vm382, 1, 0
        %v395 = vcvt.s32.f32 %v394
        %v396 = vsel %vm269, %v395, 0.0
        %v397 = vrot.slane %v396, 4
        %v398 = vadd.f32 %v396, %v397
        %v399 = vrot.slane %v398, 2
        %v400 = vadd.f32 %v398, %v399
        %v401 = vrot.slane %v400, 1
        %v402 = vadd.f32 %v400, %v401
        %v403 = vsel %vm383, 1, 0
        %v404 = vcvt.s32.f32 %v403
        %v405 = vsel %vm269, %v404, 0.0
        %v406 = vrot.slane %v405, 4
        %v407 = vadd.f32 %v405, %v406
        %v408 = vrot.slane %v407, 2
        %v409 = vadd.f32 %v407, %v408
        %v410 = vrot.slane %v409, 1
        %v411 = vadd.f32 %v409, %v410
        %v412 = vld [vmem:[%s240 + $0x3] sm:$0x1]
        %v413 = vadd.f32 %v412, %v393
        %414 = vst [vmem:[%s240 + $0x3] sm:$0x1] %v413
        %v415 = vld [vmem:[%s240 + $0x7] sm:$0x1]
        %v416 = vadd.f32 %v415, %v402
        %417 = vst [vmem:[%s240 + $0x7] sm:$0x1] %v416
        %v418 = vld [vmem:[%s240 + $0xb] sm:$0x1]
        %v419 = vadd.f32 %v418, %v411
        %420 = vst [vmem:[%s240 + $0xb] sm:$0x1] %v419
        %p421 = scmp.lt.s32.totalorder %s24, 1
        %s422 = scalar_select %p421, %s24, 1
        %p423 = scmp.lt.s32.totalorder %s25, 0
        %s424 = scalar_select %p423, %s25, 0
        %s425 = smul.addr %s424, 2
        %s426 = smul.addr %s422, 2
        %s427 = sadd.s32 %s425, %s426
        %s428 = smul.addr %s427, 8
        %s429 = scalar_lea.vmem %s2, %s428
        // Predicated region
        $region41: #{tpu_custom_call.1} parent=27 // pred_check
          %p430 = pneg %p118
        $region42: #{tpu_custom_call.1} parent=27 // pred_check_branch
          %432 = sbr.rel (%p430) target = $region44
        $region43: #{tpu_custom_call.1} parent=27 // pred_region
          _
        $region44: #{tpu_custom_call.1} parent=27 // pred_fallthru
          _
      $region28: #{tpu_custom_call.1} parent=5 // pred_fallthru
        _
      %p433 = scmp.le.s32.totalorder 2, %s14
      // Predicated region
      $region45: #{tpu_custom_call.1} parent=5 // pred_check
        %p434 = pneg %p433
      $region46: #{tpu_custom_call.1} parent=5 // pred_check_branch
        %436 = sbr.rel (%p434) target = $region48
      $region47: #{tpu_custom_call.1} parent=5 // pred_region
        %s437 = ssub.s32 %s14, 2
        // Predicated region
        $region49: #{tpu_custom_call.1} parent=47 // pred_check
          %p438 = pneg %p124
        $region50: #{tpu_custom_call.1} parent=47 // pred_check_branch
          %440 = sbr.rel (%p438) target = $region52
        $region51: #{tpu_custom_call.1} parent=47 // pred_region
          %p441 = scmp.lt.s32.totalorder %s27, 1
          %s442 = scalar_select %p441, %s27, 1
          %p443 = scmp.lt.s32.totalorder %s28, 0
          %s444 = scalar_select %p443, %s28, 0
          %s445 = smul.addr %s444, 2
          %s446 = smul.addr %s442, 2
          %s447 = sadd.s32 %s445, %s446
          %s448 = smul.addr %s447, 8
          %s449 = scalar_lea.vmem %s2, %s448
        $region52: #{tpu_custom_call.1} parent=47 // pred_fallthru
          _
      $region48: #{tpu_custom_call.1} parent=5 // pred_fallthru
        _
    $region6: #{tpu_custom_call.1} parent=1 // loop_footer
      %s18 = sadd.s32 1, %s14
    $region7: #{tpu_custom_call.1} parent=1 // loop_footer_branch
      %13 = sbr.rel target = $region3
    $region8: #{tpu_custom_call.1} parent=1 // loop_exit
      _
    %450 = vsyncpa [#allocation3], 1
    %s451 = scalar_lea.sflag [#allocation3], 1
    %452 = vsyncpa %s451, 1
    %453 = vsyncpa [#allocation5], 1
    %s454 = scalar_lea.sflag [#allocation5], 1
    %455 = vsyncpa %s454, 1

</llo_original>
